<compile_context>
chip_gen: v7x
topology: tpu7x:2x2x1
jax: 0.10.0
libtpu: 0.0.40
codegen_flags: <defaults>
</compile_context>

<pallas_src>
import math

import jax
import jax.numpy as jnp
from jax.experimental import pallas as pl
from jax.experimental.pallas import tpu as pltpu


def _build_positional_encoding(d_model: int, seq_len: int) -> jnp.ndarray:
    """Deterministic PE buffer, exactly mirroring the PyTorch __init__."""
    pe = jnp.zeros((seq_len, d_model), dtype=jnp.float32)
    position = jnp.arange(0, seq_len, dtype=jnp.float32)[:, None]          # (S, 1)
    div_term = jnp.exp(
        jnp.arange(0, d_model, 2, dtype=jnp.float32)
        * (-math.log(10000.0) / d_model)
    )                                                                       # (ceil(D/2),)
    pe = pe.at[:, 0::2].set(jnp.sin(position * div_term))
    if d_model > 1:
        if d_model % 2 == 0:
            pe = pe.at[:, 1::2].set(jnp.cos(position * div_term))
        else:
            pe = pe.at[:, 1::2].set(jnp.cos(position * div_term[0:-1]))
    return pe


def _tpu_vmem_capacity_bytes() -> int:
    """Physical VMEM per TensorCore; conservative fallback if query fails."""
    try:
        return int(pltpu.get_tpu_info().vmem_capacity_bytes)
    except Exception:
        return 64 * 1024 * 1024  # v7x per-TC VMEM (smallest of v5e/v6e/v7x)


def _tpu_num_tensorcores() -> int:
    """Best-effort TensorCore count per chip (v5e/v6e: 1, v7x: 2)."""
    try:
        info = pltpu.get_tpu_info()
        for name in ("num_cores", "core_count", "num_tensorcores", "tensorcore_count"):
            v = getattr(info, name, None)
            if v:
                return int(v)
    except Exception:
        pass
    try:
        if "v7" in jax.devices()[0].device_kind.lower():
            return 2
    except Exception:
        pass
    return 1


def _pick_tile(n: int, cap: int, unit: int) -> int:
    """Tile size <= cap for an axis of length n.

    Preference order:
      (a) the full axis if it fits (always a legal block shape),
      (b) the largest multiple of `unit` that exactly divides n (no padded
          boundary blocks -> no masked stores anywhere),
      (c) the largest multiple of `unit` <= cap (boundary block is padded by
          Pallas; correct for an elementwise add, only the edge block masks).
    """
    if n <= cap:
        return n
    if n % unit == 0:
        t = (cap // unit) * unit
        while t >= unit:
            if n % t == 0:
                return t
            t -= unit
    return max(unit, (cap // unit) * unit)


def _pe_add_kernel(x_ref, pe_ref, o_ref):
    # x_ref: (tile_r, tile_c); pe_ref: (1, tile_c) -> broadcast over sublanes.
    # The VPU broadcast+add is fully hidden under the HBM DMA (mem-bound).
    o_ref[...] = x_ref[...] + pe_ref[...]


def positional_encoding_forward(
    x: jnp.ndarray,
    pe: jnp.ndarray,
    *,
    force_pallas: bool = False,
    min_pallas_bytes: int = 1 << 20,
) -> jnp.ndarray:
    """x: (B, S, D); pe: (seq_len, D) with seq_len >= S. Returns x + pe[:S]."""
    B, S, D = x.shape
    dtype = x.dtype
    itemsize = jnp.dtype(dtype).itemsize

    # Cast once in the wrapper (single-dtype add in-kernel) and slice to the
    # actual sequence length, matching pe[:x.shape[1], :].
    pe_slice = pe[:S, :].astype(dtype)

    # Small-input fast path: custom-call + grid setup overhead dwarfs a
    # sub-MiB add; XLA's fused elementwise add is strictly faster there.
    if (not force_pallas) and (B * S * D * itemsize < min_pallas_bytes):
        return x + pe_slice[None, :, :]

    # Lane-dense view: (B, S*D). Contiguous reshape -> free in XLA.
    cols = S * D
    x2 = x.reshape(B, cols)
    pe2 = pe_slice.reshape(1, cols)

    # --- VMEM budget & tile selection ----------------------------------------
    vmem_cap = _tpu_vmem_capacity_bytes()
    # Budget for everything this kernel pipelines (<= half of physical VMEM).
    vmem_budget = max(8 << 20, min(vmem_cap // 2, 64 << 20))
    # x and out blocks are each double-buffered (4 block copies) + 2 PE tiles,
    # so cap a block at budget/5 (and ~4 MiB: bigger only burns VMEM).
    target_block_bytes = min(4 << 20, vmem_budget // 5)

    row_unit = max(1, 32 // itemsize)   # 8 f32, 16 bf16, 32 int8/fp8 (full vreg pack)
    col_unit = 128

    # Column tile: as lane-dense as possible while one row-unit of rows fits.
    col_cap = min(65536, max(col_unit, target_block_bytes // (row_unit * itemsize)))
    tile_c = _pick_tile(cols, col_cap, col_unit)
    # Row tile: fill the rest of the per-block budget.
    row_cap = max(row_unit, target_block_bytes // (tile_c * itemsize))
    tile_r = _pick_tile(B, row_cap, row_unit)

    n_c = pl.cdiv(cols, tile_c)
    n_r = pl.cdiv(B, tile_r)

    # Megacore (v7x): make sure both TensorCores get work. On single-TC
    # v5e/v6e a single fitting block stays a single block.
    num_tc = _tpu_num_tensorcores()
    if num_tc >= 2 and n_c == 1 and n_r == 1:
        if cols % (2 * col_unit) == 0:
            tile_c = cols // 2
            n_c = 2
        elif B % (2 * row_unit) == 0:
            tile_r = B // 2
            n_r = 2

    # Grid ordering: columns outer + rows inner keeps the PE block index
    # constant across consecutive steps (Pallas skips the redundant PE DMA)
    # and gives the outer parallel axis >= 2 steps whenever n_c >= 2. If the
    # column axis has only one block, PE re-DMA is moot, so put rows outer
    # (keeps the many-step axis outermost for megacore sharding).
    cols_outer = (n_c >= 2) or (n_r == 1)
    if cols_outer:
        grid = (n_c, n_r)
        x_map = lambda c, r: (r, c)
        pe_map = lambda c, r: (0, c)
    else:
        grid = (n_r, n_c)
        x_map = lambda r, c: (r, c)
        pe_map = lambda r, c: (0, c)

    out2 = pl.pallas_call(
        _pe_add_kernel,
        out_shape=jax.ShapeDtypeStruct((B, cols), dtype),
        grid_spec=pltpu.PrefetchScalarGridSpec(
            num_scalar_prefetch=0,
            grid=grid,
            in_specs=[
                pl.BlockSpec((tile_r, tile_c), x_map),   # x tile
                pl.BlockSpec((1, tile_c), pe_map),       # small PE tile
            ],
            out_specs=pl.BlockSpec((tile_r, tile_c), x_map),
        ),
        # Output reuses x's HBM buffer (no extra full-size allocation; lets
        # XLA skip a defensive copy when x is dead after this op).
        input_output_aliases={0: 0},
        compiler_params=pltpu.CompilerParams(
            dimension_semantics=("parallel", "parallel"),
            vmem_limit_bytes=vmem_budget,
        ),
        cost_estimate=pl.CostEstimate(
            flops=B * cols,
            transcendentals=0,
            bytes_accessed=(2 * B * cols + cols) * itemsize,
        ),
    )(x2, pe2)

    return out2.reshape(B, S, D)


if __name__ == "__main__":
    # Small shapes consistent with the module: batch=2, seq=8, d_model=32.
    batch, seq, d_model = 2, 8, 32
    max_seq_len = 16  # buffer seq_len >= actual seq, exercising pe[:x.shape[1], :]

    key = jax.random.PRNGKey(0)
    x = jax.random.normal(key, (batch, seq, d_model), dtype=jnp.float32)
    pe = _build_positional_encoding(d_model, max_seq_len)

    # Plain-JAX reference (same semantics as the PyTorch forward).
    ref = x + pe[:seq, :]

    # 1) Exercise the Pallas kernel (forced: this shape is below the small-input
    #    fast-path threshold where XLA's fused add would normally be used).
    out = positional_encoding_forward(x, pe, force_pallas=True)
    out = jax.block_until_ready(out)
    assert out.shape == (batch, seq, d_model)
    assert jnp.allclose(out, ref, atol=1e-6), "pallas path mismatch vs reference"

    # 2) Default dispatch (small-input fast path) must match as well.
    out_fast = jax.block_until_ready(positional_encoding_forward(x, pe))
    assert jnp.allclose(out_fast, ref, atol=1e-6), "fast path mismatch vs reference"

    print("KERNEL_OK")
</pallas_src>

<mosaic_0001>
module attributes {stable_mosaic.version = 11 : i64} {
  func.func @_pe_add_kernel(%arg0: i32, %arg1: i32, %arg2: memref<2x256xf32, #tpu.memory_space<vmem>>, %arg3: memref<1x256xf32, #tpu.memory_space<vmem>>, %arg4: memref<2x256xf32, #tpu.memory_space<vmem>>) attributes {dimension_semantics = [#tpu.dimension_semantics<parallel>, #tpu.dimension_semantics<parallel>], iteration_bounds = array<i64: 1, 1>, scalar_prefetch = 0 : i64, scratch_operands = 0 : i64, tpu.core_type = #tpu.core_type<tc>, window_params = [{transform_indices = @transform_0, window_bounds = array<i64: 2, 256>}, {transform_indices = @transform_1, window_bounds = array<i64: 1, 256>}, {transform_indices = @transform_2, window_bounds = array<i64: 2, 256>}]} {
    %c0 = arith.constant 0 : index
    %c0_0 = arith.constant 0 : index
    %0 = vector.load %arg2[%c0, %c0_0] : memref<2x256xf32, #tpu.memory_space<vmem>>, vector<2x256xf32>
    %c0_1 = arith.constant 0 : index
    %c0_2 = arith.constant 0 : index
    %1 = vector.load %arg3[%c0_1, %c0_2] : memref<1x256xf32, #tpu.memory_space<vmem>>, vector<1x256xf32>
    %2 = vector.broadcast %1 : vector<1x256xf32> to vector<2x256xf32>
    %3 = arith.addf %0, %2 : vector<2x256xf32>
    %c0_3 = arith.constant 0 : index
    %c0_4 = arith.constant 0 : index
    %4 = vector.load %arg4[%c0_3, %c0_4] : memref<2x256xf32, #tpu.memory_space<vmem>>, vector<2x256xf32>
    tpu.vector_store %arg4[%c0_3, %c0_4], %3 {strides = array<i32>} : memref<2x256xf32, #tpu.memory_space<vmem>>, vector<2x256xf32>,
    return
  }
  func.func @transform_0(%arg0: i32, %arg1: i32) -> (i32, i32) {
    %c0_i32 = arith.constant 0 : i32
    return %arg1, %arg0 : i32, i32
  }
  func.func @transform_1(%arg0: i32, %arg1: i32) -> (i32, i32) {
    %c0_i32 = arith.constant 0 : i32
    %c0_i32_0 = arith.constant 0 : i32
    return %c0_i32, %arg0 : i32, i32
  }
  func.func @transform_2(%arg0: i32, %arg1: i32) -> (i32, i32) {
    %c0_i32 = arith.constant 0 : i32
    return %arg1, %arg0 : i32, i32
  }
}

</mosaic_0001>

<llo_original>
// kernel: tpu_custom_call.1
$region0: #{tpu_custom_call.1}
  #allocation0 [shape = 'u32[]', space=smem, size = 0x4, offset = 0x4, fixed_abs, tag = 'smem constant byte address 0x4 - core index']
  #allocation1 [shape = 'u32[144,128]{1,0:T(1,128)}', space=vmem, size = 0x12000, scoped, tag = 'internal scratch']
  %s0 = inlined_call_operand.hbm [shape: f32[2,256], index: 0, kind: input, shape index: {}, may-alias: {0,2}]
  %s1 = inlined_call_operand.vmem [shape: f32[1,256], index: 1, kind: input, shape index: {}]
  %s2 = inlined_call_operand.hbm [shape: f32[2,256], index: 2, kind: output, shape index: {}, may-alias: {0,2}]
  %s3 = sld [smem:[#allocation0]]
  $region22: #{tpu_custom_call.1} parent=0
    _
  %s5 = ssub.s32 1, %s3
  %s6 = scalar_select 0, %s5, %s3
  $region1: #{tpu_custom_call.1} parent=0
    #allocation2 [shape = 'u8[2048]{0}', space=vmem, size = 0x800, scoped, tag = 'input window, operand 0, single buffered']
    #allocation3 [shape = 's32[1]{0}', space=sflag, size = 0x4, scoped, tag = 'scoped memory for tpu_custom_call.1']
    #allocation4 [shape = 's32[1]{0}', space=sflag, size = 0x4, scoped, tag = 'scoped memory for tpu_custom_call.1']
    #allocation5 [shape = 'u8[2048]{0}', space=vmem, size = 0x800, scoped, tag = 'output window, operand 0, single buffered']
    %7 = vsyncpa [#allocation3], 0
    %8 = vsyncpa [#allocation4], 0
    // Predicated region
    $region2: #{tpu_custom_call.1} parent=1 // pred_check
      _
    $region3: #{tpu_custom_call.1} parent=1 // pred_check_branch
      %10 = sbr.rel (0) target = $region5
    $region4: #{tpu_custom_call.1} parent=1 // pred_region
      %s12 = ssub.s32 64, 64
      %13 = vsyncadd [#allocation3], %s12
      %s15 = sshll.u32 [#allocation2], 4
      %s16 = int_to_ptr.vmem [resolvable:$true] %s15
      %18 = dma.hbm_to_vmem [thread:$0]  %s0, 64, %s16, [#allocation3]
    $region5: #{tpu_custom_call.1} parent=1 // pred_fallthru
      _
    // Predicated region
    $region6: #{tpu_custom_call.1} parent=1 // pred_check
      _
    $region7: #{tpu_custom_call.1} parent=1 // pred_check_branch
      %20 = sbr.rel (0) target = $region9
    $region8: #{tpu_custom_call.1} parent=1 // pred_region
      _
    $region9: #{tpu_custom_call.1} parent=1 // pred_fallthru
      _
    // Predicated region
    $region10: #{tpu_custom_call.1} parent=1 // pred_check
      _
    $region11: #{tpu_custom_call.1} parent=1 // pred_check_branch
      %22 = sbr.rel (0) target = $region13
    $region12: #{tpu_custom_call.1} parent=1 // pred_region
      %23 = dma.done [#allocation3], 64
    $region13: #{tpu_custom_call.1} parent=1 // pred_fallthru
      _
    %v24 = vld [vmem:[#allocation2] sm:$0xf]
    %v25 = vld [vmem:[%s1] sm:$0x3]
    %v27 = vlaneseq
    %v28 = vshrl.u32 %v27, 7
    %v29 = vsub.s32 0, %v28
    %v30 = vrot.slane %v25, %v29
    %v31 = vlaneseq
    %v32 = vshrl.u32 %v31, 7
    %v33 = vsub.s32 1, %v32
    %v34 = vrot.slane %v25, %v33
    %v35 = vcombine.low %v30, %v34
    %v37 = vunpack.c.l.s4 1983009808
    %v38 = vunpack.c.0.s8 %v37
    %v39 = vlaneseq
    %v40 = vshrl.u32 %v39, 7
    %v41 = vsub.s32 %v38, %v40
    %v42 = vrot.slane %v35, %v41
    %v44 = vadd.f32 %v24, %v42
    %45 = vst [vmem:[#allocation5] sm:$0xf] %v44
    // Predicated region
    $region14: #{tpu_custom_call.1} parent=1 // pred_check
      _
    $region15: #{tpu_custom_call.1} parent=1 // pred_check_branch
      %47 = sbr.rel (0) target = $region17
    $region16: #{tpu_custom_call.1} parent=1 // pred_region
      %s49 = ssub.s32 64, 64
      %50 = vsyncadd [#allocation4], %s49
      %s52 = sshll.u32 [#allocation5], 4
      %s53 = int_to_ptr.vmem [resolvable:$true] %s52
      %55 = dma.vmem_to_hbm [thread:$0]  %s53, 64, %s2, [#allocation4]
    $region17: #{tpu_custom_call.1} parent=1 // pred_fallthru
      _
    // Predicated region
    $region18: #{tpu_custom_call.1} parent=1 // pred_check
      _
    $region19: #{tpu_custom_call.1} parent=1 // pred_check_branch
      %57 = sbr.rel (0) target = $region21
    $region20: #{tpu_custom_call.1} parent=1 // pred_region
      %58 = dma.done [#allocation4], 64
    $region21: #{tpu_custom_call.1} parent=1 // pred_fallthru
      _
    %59 = vsyncpa [#allocation3], 1
    %60 = vsyncpa [#allocation4], 1

</llo_original>
